<compile_context>
chip_gen: v5e
topology: v5e:2x2
jax: 0.10.0
libtpu: 0.0.40
codegen_flags: <defaults>
</compile_context>

<pallas_src>
import jax
import jax.numpy as jnp
from jax.experimental import pallas as pl
from jax.experimental.pallas import tpu as pltpu

EPS = 1e-5
LANE = 128


def _round_up(n, m):
    return ((n + m - 1) // m) * m


def _resid_block_kernel(x_ref, w1_ref, bn1_ref, w2_ref, bn2_ref, o_ref):
    """Whole ResidualBlock1d in a single invocation; static loop over layers."""
    n_layers = w1_ref.shape[0]
    x = x_ref[...].astype(jnp.float32)                                  # (B, Cp)

    for l in range(n_layers):                                           # unrolled (L small, static)
        # ---- Linear(ch_in -> ch_hidden), bias=False  (MXU) ----
        h = jnp.dot(x, w1_ref[l], preferred_element_type=jnp.float32)   # (B, Hp)

        # ---- BatchNorm1d(ch_hidden), train-mode batch stats, folded scale/bias ----
        bn1 = bn1_ref[l]                                                # (2, Hp): [gamma; beta]
        mu1 = jnp.mean(h, axis=0, keepdims=True)
        var1 = jnp.mean((h - mu1) * (h - mu1), axis=0, keepdims=True)   # biased, two-pass
        scale1 = bn1[0:1, :] * jax.lax.rsqrt(var1 + EPS)                # (1, Hp)
        bias1 = bn1[1:2, :] - mu1 * scale1                              # (1, Hp)
        h = jnp.maximum(h * scale1 + bias1, 0.0)                        # BN + ReLU (2 bulk passes)

        # ---- Linear(ch_hidden -> ch_in), bias=False  (MXU) ----
        r = jnp.dot(h, w2_ref[l], preferred_element_type=jnp.float32)   # (B, Cp)

        # ---- BatchNorm1d(ch_in), folded scale/bias ----
        bn2 = bn2_ref[l]                                                # (2, Cp)
        mu2 = jnp.mean(r, axis=0, keepdims=True)
        var2 = jnp.mean((r - mu2) * (r - mu2), axis=0, keepdims=True)
        scale2 = bn2[0:1, :] * jax.lax.rsqrt(var2 + EPS)
        bias2 = bn2[1:2, :] - mu2 * scale2

        # ---- residual add + final ReLU ----
        x = jnp.maximum(x + r * scale2 + bias2, 0.0)

    o_ref[...] = x.astype(o_ref.dtype)


@jax.jit
def residual_block_1d(x, params):
    """x: (B, C) float32. params: dict of stacked per-layer weights."""
    B, C = x.shape
    L, _, H = params["w1"].shape
    Cp, Hp = _round_up(C, LANE), _round_up(H, LANE)

    # Lane-dense zero padding of the feature axes (layout plumbing only).
    xp = jnp.pad(x, ((0, 0), (0, Cp - C)))
    w1 = jnp.pad(params["w1"], ((0, 0), (0, Cp - C), (0, Hp - H)))       # (L, Cp, Hp)
    w2 = jnp.pad(params["w2"], ((0, 0), (0, Hp - H), (0, Cp - C)))       # (L, Hp, Cp)
    bn1 = jnp.pad(jnp.stack([params["g1"], params["b1"]], axis=1),
                  ((0, 0), (0, 0), (0, Hp - H)))                         # (L, 2, Hp)
    bn2 = jnp.pad(jnp.stack([params["g2"], params["b2"]], axis=1),
                  ((0, 0), (0, 0), (0, Cp - C)))                         # (L, 2, Cp)

    out_p = pl.pallas_call(
        _resid_block_kernel,
        out_shape=jax.ShapeDtypeStruct((B, Cp), x.dtype),
        grid=(1,),
        in_specs=[
            pl.BlockSpec((B, Cp), lambda i: (0, 0)),        # x (full, VMEM-resident)
            pl.BlockSpec((L, Cp, Hp), lambda i: (0, 0, 0)),  # all W1
            pl.BlockSpec((L, 2, Hp), lambda i: (0, 0, 0)),   # packed gamma1/beta1
            pl.BlockSpec((L, Hp, Cp), lambda i: (0, 0, 0)),  # all W2
            pl.BlockSpec((L, 2, Cp), lambda i: (0, 0, 0)),   # packed gamma2/beta2
        ],
        out_specs=pl.BlockSpec((B, Cp), lambda i: (0, 0)),
        compiler_params=pltpu.CompilerParams(
            dimension_semantics=("arbitrary",)),
    )(xp, w1, bn1, w2, bn2)

    return out_p[:, :C]


def init_params(key, ch_in, ch_hidden, n_layers):
    """Deterministic synthetic init (shapes match the PyTorch module)."""
    ks = jax.random.split(key, 6)
    s1 = 1.0 / jnp.sqrt(ch_in)
    s2 = 1.0 / jnp.sqrt(ch_hidden)
    return {
        "w1": jax.random.uniform(ks[0], (n_layers, ch_in, ch_hidden),
                                 jnp.float32, -s1, s1),
        "w2": jax.random.uniform(ks[1], (n_layers, ch_hidden, ch_in),
                                 jnp.float32, -s2, s2),
        # BN affine params (non-default so the BN math is exercised).
        "g1": 1.0 + 0.1 * jax.random.normal(ks[2], (n_layers, ch_hidden), jnp.float32),
        "b1": 0.1 * jax.random.normal(ks[3], (n_layers, ch_hidden), jnp.float32),
        "g2": 1.0 + 0.1 * jax.random.normal(ks[4], (n_layers, ch_in), jnp.float32),
        "b2": 0.1 * jax.random.normal(ks[5], (n_layers, ch_in), jnp.float32),
    }


def reference_forward(x, params):
    """Pure-JAX reference mirroring the PyTorch forward (train-mode BN)."""
    L = params["w1"].shape[0]
    for l in range(L):
        h = x @ params["w1"][l]
        mu = h.mean(0, keepdims=True)
        var = ((h - mu) ** 2).mean(0, keepdims=True)
        h = (h - mu) / jnp.sqrt(var + EPS) * params["g1"][l] + params["b1"][l]
        h = jnp.maximum(h, 0.0)
        r = h @ params["w2"][l]
        mu2 = r.mean(0, keepdims=True)
        var2 = ((r - mu2) ** 2).mean(0, keepdims=True)
        r = (r - mu2) / jnp.sqrt(var2 + EPS) * params["g2"][l] + params["b2"][l]
        x = jnp.maximum(x + r, 0.0)
    return x


if __name__ == "__main__":
    B, CH_IN, CH_HIDDEN, N_LAYERS = 8, 32, 64, 3

    key = jax.random.PRNGKey(0)
    kx, kp = jax.random.split(key)
    x = jax.random.normal(kx, (B, CH_IN), jnp.float32)
    params = init_params(kp, CH_IN, CH_HIDDEN, N_LAYERS)

    out = residual_block_1d(x, params)
    out = jax.block_until_ready(out)

    ref = reference_forward(x, params)
    assert out.shape == (B, CH_IN) and out.dtype == jnp.float32
    assert jnp.allclose(out, ref, atol=1e-4, rtol=1e-4), "mismatch vs reference"

    print("KERNEL_OK")
</pallas_src>

<mosaic_0001>
module attributes {stable_mosaic.version = 11 : i64} {
  func.func @_resid_block_kernel(%arg0: i32, %arg1: memref<8x128xf32, #tpu.memory_space<vmem>>, %arg2: memref<3x128x128xf32, #tpu.memory_space<vmem>>, %arg3: memref<3x2x128xf32, #tpu.memory_space<vmem>>, %arg4: memref<3x128x128xf32, #tpu.memory_space<vmem>>, %arg5: memref<3x2x128xf32, #tpu.memory_space<vmem>>, %arg6: memref<8x128xf32, #tpu.memory_space<vmem>>) attributes {dimension_semantics = [#tpu.dimension_semantics<arbitrary>], iteration_bounds = array<i64: 1>, scalar_prefetch = 0 : i64, scratch_operands = 0 : i64, tpu.core_type = #tpu.core_type<tc>, window_params = [{pipeline_mode = #tpu.pipeline_mode<synchronous>, transform_indices = @transform_0, window_bounds = array<i64: 8, 128>}, {pipeline_mode = #tpu.pipeline_mode<synchronous>, transform_indices = @transform_1, window_bounds = array<i64: 3, 128, 128>}, {pipeline_mode = #tpu.pipeline_mode<synchronous>, transform_indices = @transform_2, window_bounds = array<i64: 3, 2, 128>}, {pipeline_mode = #tpu.pipeline_mode<synchronous>, transform_indices = @transform_3, window_bounds = array<i64: 3, 128, 128>}, {pipeline_mode = #tpu.pipeline_mode<synchronous>, transform_indices = @transform_4, window_bounds = array<i64: 3, 2, 128>}, {pipeline_mode = #tpu.pipeline_mode<synchronous>, transform_indices = @transform_5, window_bounds = array<i64: 8, 128>}]} {
    %c0 = arith.constant 0 : index
    %c0_0 = arith.constant 0 : index
    %0 = vector.load %arg1[%c0, %c0_0] : memref<8x128xf32, #tpu.memory_space<vmem>>, vector<8x128xf32>
    %c0_1 = arith.constant 0 : index
    %c0_2 = arith.constant 0 : index
    %c0_3 = arith.constant 0 : index
    %1 = vector.load %arg2[%c0_1, %c0_2, %c0_3] : memref<3x128x128xf32, #tpu.memory_space<vmem>>, vector<1x128x128xf32>
    %2 = vector.shape_cast %1 : vector<1x128x128xf32> to vector<128x128xf32>
    %cst = arith.constant dense<0.000000e+00> : vector<8x128xf32>
    %3 = tpu.matmul %0, %2, %cst {dimension_numbers = #tpu.dot_dimension_numbers<[1], [0], [0], [1], [0, 0, 1, 1], [], []>} : vector<8x128xf32>, vector<128x128xf32>, vector<8x128xf32> -> vector<8x128xf32>
    %c0_4 = arith.constant 0 : index
    %c0_5 = arith.constant 0 : index
    %c0_6 = arith.constant 0 : index
    %4 = vector.load %arg3[%c0_4, %c0_5, %c0_6] : memref<3x2x128xf32, #tpu.memory_space<vmem>>, vector<1x2x128xf32>
    %5 = vector.shape_cast %4 : vector<1x2x128xf32> to vector<2x128xf32>
    %cst_7 = arith.constant dense<0.000000e+00> : vector<128xf32>
    %6 = vector.multi_reduction <add>, %3, %cst_7 [0] : vector<8x128xf32> to vector<128xf32>
    %7 = vector.shape_cast %6 : vector<128xf32> to vector<1x128xf32>
    %cst_8 = arith.constant 8.000000e+00 : f32
    %8 = vector.broadcast %cst_8 : f32 to vector<1x128xf32>
    %9 = arith.divf %7, %8 : vector<1x128xf32>
    %10 = vector.broadcast %9 : vector<1x128xf32> to vector<8x128xf32>
    %11 = arith.subf %3, %10 : vector<8x128xf32>
    %12 = vector.broadcast %9 : vector<1x128xf32> to vector<8x128xf32>
    %13 = arith.subf %3, %12 : vector<8x128xf32>
    %14 = arith.mulf %11, %13 : vector<8x128xf32>
    %cst_9 = arith.constant dense<0.000000e+00> : vector<128xf32>
    %15 = vector.multi_reduction <add>, %14, %cst_9 [0] : vector<8x128xf32> to vector<128xf32>
    %16 = vector.shape_cast %15 : vector<128xf32> to vector<1x128xf32>
    %cst_10 = arith.constant 8.000000e+00 : f32
    %17 = vector.broadcast %cst_10 : f32 to vector<1x128xf32>
    %18 = arith.divf %16, %17 : vector<1x128xf32>
    %19 = vector.extract_strided_slice %5 {offsets = [0, 0], sizes = [1, 128], strides = [1, 1]} : vector<2x128xf32> to vector<1x128xf32>
    %cst_11 = arith.constant 9.99999974E-6 : f32
    %20 = vector.broadcast %cst_11 : f32 to vector<1x128xf32>
    %21 = arith.addf %18, %20 : vector<1x128xf32>
    %22 = math.rsqrt %21 : vector<1x128xf32>
    %23 = arith.mulf %19, %22 : vector<1x128xf32>
    %24 = vector.extract_strided_slice %5 {offsets = [1, 0], sizes = [1, 128], strides = [1, 1]} : vector<2x128xf32> to vector<1x128xf32>
    %25 = arith.mulf %9, %23 : vector<1x128xf32>
    %26 = arith.subf %24, %25 : vector<1x128xf32>
    %27 = vector.broadcast %23 : vector<1x128xf32> to vector<8x128xf32>
    %28 = arith.mulf %3, %27 : vector<8x128xf32>
    %29 = vector.broadcast %26 : vector<1x128xf32> to vector<8x128xf32>
    %30 = arith.addf %28, %29 : vector<8x128xf32>
    %cst_12 = arith.constant 0.000000e+00 : f32
    %31 = vector.broadcast %cst_12 : f32 to vector<8x128xf32>
    %32 = arith.maximumf %30, %31 : vector<8x128xf32>
    %c0_13 = arith.constant 0 : index
    %c0_14 = arith.constant 0 : index
    %c0_15 = arith.constant 0 : index
    %33 = vector.load %arg4[%c0_13, %c0_14, %c0_15] : memref<3x128x128xf32, #tpu.memory_space<vmem>>, vector<1x128x128xf32>
    %34 = vector.shape_cast %33 : vector<1x128x128xf32> to vector<128x128xf32>
    %cst_16 = arith.constant dense<0.000000e+00> : vector<8x128xf32>
    %35 = tpu.matmul %32, %34, %cst_16 {dimension_numbers = #tpu.dot_dimension_numbers<[1], [0], [0], [1], [0, 0, 1, 1], [], []>} : vector<8x128xf32>, vector<128x128xf32>, vector<8x128xf32> -> vector<8x128xf32>
    %c0_17 = arith.constant 0 : index
    %c0_18 = arith.constant 0 : index
    %c0_19 = arith.constant 0 : index
    %36 = vector.load %arg5[%c0_17, %c0_18, %c0_19] : memref<3x2x128xf32, #tpu.memory_space<vmem>>, vector<1x2x128xf32>
    %37 = vector.shape_cast %36 : vector<1x2x128xf32> to vector<2x128xf32>
    %cst_20 = arith.constant dense<0.000000e+00> : vector<128xf32>
    %38 = vector.multi_reduction <add>, %35, %cst_20 [0] : vector<8x128xf32> to vector<128xf32>
    %39 = vector.shape_cast %38 : vector<128xf32> to vector<1x128xf32>
    %cst_21 = arith.constant 8.000000e+00 : f32
    %40 = vector.broadcast %cst_21 : f32 to vector<1x128xf32>
    %41 = arith.divf %39, %40 : vector<1x128xf32>
    %42 = vector.broadcast %41 : vector<1x128xf32> to vector<8x128xf32>
    %43 = arith.subf %35, %42 : vector<8x128xf32>
    %44 = vector.broadcast %41 : vector<1x128xf32> to vector<8x128xf32>
    %45 = arith.subf %35, %44 : vector<8x128xf32>
    %46 = arith.mulf %43, %45 : vector<8x128xf32>
    %cst_22 = arith.constant dense<0.000000e+00> : vector<128xf32>
    %47 = vector.multi_reduction <add>, %46, %cst_22 [0] : vector<8x128xf32> to vector<128xf32>
    %48 = vector.shape_cast %47 : vector<128xf32> to vector<1x128xf32>
    %cst_23 = arith.constant 8.000000e+00 : f32
    %49 = vector.broadcast %cst_23 : f32 to vector<1x128xf32>
    %50 = arith.divf %48, %49 : vector<1x128xf32>
    %51 = vector.extract_strided_slice %37 {offsets = [0, 0], sizes = [1, 128], strides = [1, 1]} : vector<2x128xf32> to vector<1x128xf32>
    %cst_24 = arith.constant 9.99999974E-6 : f32
    %52 = vector.broadcast %cst_24 : f32 to vector<1x128xf32>
    %53 = arith.addf %50, %52 : vector<1x128xf32>
    %54 = math.rsqrt %53 : vector<1x128xf32>
    %55 = arith.mulf %51, %54 : vector<1x128xf32>
    %56 = vector.extract_strided_slice %37 {offsets = [1, 0], sizes = [1, 128], strides = [1, 1]} : vector<2x128xf32> to vector<1x128xf32>
    %57 = arith.mulf %41, %55 : vector<1x128xf32>
    %58 = arith.subf %56, %57 : vector<1x128xf32>
    %59 = vector.broadcast %55 : vector<1x128xf32> to vector<8x128xf32>
    %60 = arith.mulf %35, %59 : vector<8x128xf32>
    %61 = arith.addf %0, %60 : vector<8x128xf32>
    %62 = vector.broadcast %58 : vector<1x128xf32> to vector<8x128xf32>
    %63 = arith.addf %61, %62 : vector<8x128xf32>
    %cst_25 = arith.constant 0.000000e+00 : f32
    %64 = vector.broadcast %cst_25 : f32 to vector<8x128xf32>
    %65 = arith.maximumf %63, %64 : vector<8x128xf32>
    %c1 = arith.constant 1 : index
    %c0_26 = arith.constant 0 : index
    %c0_27 = arith.constant 0 : index
    %66 = vector.load %arg2[%c1, %c0_26, %c0_27] : memref<3x128x128xf32, #tpu.memory_space<vmem>>, vector<1x128x128xf32>
    %67 = vector.shape_cast %66 : vector<1x128x128xf32> to vector<128x128xf32>
    %cst_28 = arith.constant dense<0.000000e+00> : vector<8x128xf32>
    %68 = tpu.matmul %65, %67, %cst_28 {dimension_numbers = #tpu.dot_dimension_numbers<[1], [0], [0], [1], [0, 0, 1, 1], [], []>} : vector<8x128xf32>, vector<128x128xf32>, vector<8x128xf32> -> vector<8x128xf32>
    %c1_29 = arith.constant 1 : index
    %c0_30 = arith.constant 0 : index
    %c0_31 = arith.constant 0 : index
    %69 = vector.load %arg3[%c1_29, %c0_30, %c0_31] : memref<3x2x128xf32, #tpu.memory_space<vmem>>, vector<1x2x128xf32>
    %70 = vector.shape_cast %69 : vector<1x2x128xf32> to vector<2x128xf32>
    %cst_32 = arith.constant dense<0.000000e+00> : vector<128xf32>
    %71 = vector.multi_reduction <add>, %68, %cst_32 [0] : vector<8x128xf32> to vector<128xf32>
    %72 = vector.shape_cast %71 : vector<128xf32> to vector<1x128xf32>
    %cst_33 = arith.constant 8.000000e+00 : f32
    %73 = vector.broadcast %cst_33 : f32 to vector<1x128xf32>
    %74 = arith.divf %72, %73 : vector<1x128xf32>
    %75 = vector.broadcast %74 : vector<1x128xf32> to vector<8x128xf32>
    %76 = arith.subf %68, %75 : vector<8x128xf32>
    %77 = vector.broadcast %74 : vector<1x128xf32> to vector<8x128xf32>
    %78 = arith.subf %68, %77 : vector<8x128xf32>
    %79 = arith.mulf %76, %78 : vector<8x128xf32>
    %cst_34 = arith.constant dense<0.000000e+00> : vector<128xf32>
    %80 = vector.multi_reduction <add>, %79, %cst_34 [0] : vector<8x128xf32> to vector<128xf32>
    %81 = vector.shape_cast %80 : vector<128xf32> to vector<1x128xf32>
    %cst_35 = arith.constant 8.000000e+00 : f32
    %82 = vector.broadcast %cst_35 : f32 to vector<1x128xf32>
    %83 = arith.divf %81, %82 : vector<1x128xf32>
    %84 = vector.extract_strided_slice %70 {offsets = [0, 0], sizes = [1, 128], strides = [1, 1]} : vector<2x128xf32> to vector<1x128xf32>
    %cst_36 = arith.constant 9.99999974E-6 : f32
    %85 = vector.broadcast %cst_36 : f32 to vector<1x128xf32>
    %86 = arith.addf %83, %85 : vector<1x128xf32>
    %87 = math.rsqrt %86 : vector<1x128xf32>
    %88 = arith.mulf %84, %87 : vector<1x128xf32>
    %89 = vector.extract_strided_slice %70 {offsets = [1, 0], sizes = [1, 128], strides = [1, 1]} : vector<2x128xf32> to vector<1x128xf32>
    %90 = arith.mulf %74, %88 : vector<1x128xf32>
    %91 = arith.subf %89, %90 : vector<1x128xf32>
    %92 = vector.broadcast %88 : vector<1x128xf32> to vector<8x128xf32>
    %93 = arith.mulf %68, %92 : vector<8x128xf32>
    %94 = vector.broadcast %91 : vector<1x128xf32> to vector<8x128xf32>
    %95 = arith.addf %93, %94 : vector<8x128xf32>
    %cst_37 = arith.constant 0.000000e+00 : f32
    %96 = vector.broadcast %cst_37 : f32 to vector<8x128xf32>
    %97 = arith.maximumf %95, %96 : vector<8x128xf32>
    %c1_38 = arith.constant 1 : index
    %c0_39 = arith.constant 0 : index
    %c0_40 = arith.constant 0 : index
    %98 = vector.load %arg4[%c1_38, %c0_39, %c0_40] : memref<3x128x128xf32, #tpu.memory_space<vmem>>, vector<1x128x128xf32>
    %99 = vector.shape_cast %98 : vector<1x128x128xf32> to vector<128x128xf32>
    %cst_41 = arith.constant dense<0.000000e+00> : vector<8x128xf32>
    %100 = tpu.matmul %97, %99, %cst_41 {dimension_numbers = #tpu.dot_dimension_numbers<[1], [0], [0], [1], [0, 0, 1, 1], [], []>} : vector<8x128xf32>, vector<128x128xf32>, vector<8x128xf32> -> vector<8x128xf32>
    %c1_42 = arith.constant 1 : index
    %c0_43 = arith.constant 0 : index
    %c0_44 = arith.constant 0 : index
    %101 = vector.load %arg5[%c1_42, %c0_43, %c0_44] : memref<3x2x128xf32, #tpu.memory_space<vmem>>, vector<1x2x128xf32>
    %102 = vector.shape_cast %101 : vector<1x2x128xf32> to vector<2x128xf32>
    %cst_45 = arith.constant dense<0.000000e+00> : vector<128xf32>
    %103 = vector.multi_reduction <add>, %100, %cst_45 [0] : vector<8x128xf32> to vector<128xf32>
    %104 = vector.shape_cast %103 : vector<128xf32> to vector<1x128xf32>
    %cst_46 = arith.constant 8.000000e+00 : f32
    %105 = vector.broadcast %cst_46 : f32 to vector<1x128xf32>
    %106 = arith.divf %104, %105 : vector<1x128xf32>
    %107 = vector.broadcast %106 : vector<1x128xf32> to vector<8x128xf32>
    %108 = arith.subf %100, %107 : vector<8x128xf32>
    %109 = vector.broadcast %106 : vector<1x128xf32> to vector<8x128xf32>
    %110 = arith.subf %100, %109 : vector<8x128xf32>
    %111 = arith.mulf %108, %110 : vector<8x128xf32>
    %cst_47 = arith.constant dense<0.000000e+00> : vector<128xf32>
    %112 = vector.multi_reduction <add>, %111, %cst_47 [0] : vector<8x128xf32> to vector<128xf32>
    %113 = vector.shape_cast %112 : vector<128xf32> to vector<1x128xf32>
    %cst_48 = arith.constant 8.000000e+00 : f32
    %114 = vector.broadcast %cst_48 : f32 to vector<1x128xf32>
    %115 = arith.divf %113, %114 : vector<1x128xf32>
    %116 = vector.extract_strided_slice %102 {offsets = [0, 0], sizes = [1, 128], strides = [1, 1]} : vector<2x128xf32> to vector<1x128xf32>
    %cst_49 = arith.constant 9.99999974E-6 : f32
    %117 = vector.broadcast %cst_49 : f32 to vector<1x128xf32>
    %118 = arith.addf %115, %117 : vector<1x128xf32>
    %119 = math.rsqrt %118 : vector<1x128xf32>
    %120 = arith.mulf %116, %119 : vector<1x128xf32>
    %121 = vector.extract_strided_slice %102 {offsets = [1, 0], sizes = [1, 128], strides = [1, 1]} : vector<2x128xf32> to vector<1x128xf32>
    %122 = arith.mulf %106, %120 : vector<1x128xf32>
    %123 = arith.subf %121, %122 : vector<1x128xf32>
    %124 = vector.broadcast %120 : vector<1x128xf32> to vector<8x128xf32>
    %125 = arith.mulf %100, %124 : vector<8x128xf32>
    %126 = arith.addf %65, %125 : vector<8x128xf32>
    %127 = vector.broadcast %123 : vector<1x128xf32> to vector<8x128xf32>
    %128 = arith.addf %126, %127 : vector<8x128xf32>
    %cst_50 = arith.constant 0.000000e+00 : f32
    %129 = vector.broadcast %cst_50 : f32 to vector<8x128xf32>
    %130 = arith.maximumf %128, %129 : vector<8x128xf32>
    %c2 = arith.constant 2 : index
    %c0_51 = arith.constant 0 : index
    %c0_52 = arith.constant 0 : index
    %131 = vector.load %arg2[%c2, %c0_51, %c0_52] : memref<3x128x128xf32, #tpu.memory_space<vmem>>, vector<1x128x128xf32>
    %132 = vector.shape_cast %131 : vector<1x128x128xf32> to vector<128x128xf32>
    %cst_53 = arith.constant dense<0.000000e+00> : vector<8x128xf32>
    %133 = tpu.matmul %130, %132, %cst_53 {dimension_numbers = #tpu.dot_dimension_numbers<[1], [0], [0], [1], [0, 0, 1, 1], [], []>} : vector<8x128xf32>, vector<128x128xf32>, vector<8x128xf32> -> vector<8x128xf32>
    %c2_54 = arith.constant 2 : index
    %c0_55 = arith.constant 0 : index
    %c0_56 = arith.constant 0 : index
    %134 = vector.load %arg3[%c2_54, %c0_55, %c0_56] : memref<3x2x128xf32, #tpu.memory_space<vmem>>, vector<1x2x128xf32>
    %135 = vector.shape_cast %134 : vector<1x2x128xf32> to vector<2x128xf32>
    %cst_57 = arith.constant dense<0.000000e+00> : vector<128xf32>
    %136 = vector.multi_reduction <add>, %133, %cst_57 [0] : vector<8x128xf32> to vector<128xf32>
    %137 = vector.shape_cast %136 : vector<128xf32> to vector<1x128xf32>
    %cst_58 = arith.constant 8.000000e+00 : f32
    %138 = vector.broadcast %cst_58 : f32 to vector<1x128xf32>
    %139 = arith.divf %137, %138 : vector<1x128xf32>
    %140 = vector.broadcast %139 : vector<1x128xf32> to vector<8x128xf32>
    %141 = arith.subf %133, %140 : vector<8x128xf32>
    %142 = vector.broadcast %139 : vector<1x128xf32> to vector<8x128xf32>
    %143 = arith.subf %133, %142 : vector<8x128xf32>
    %144 = arith.mulf %141, %143 : vector<8x128xf32>
    %cst_59 = arith.constant dense<0.000000e+00> : vector<128xf32>
    %145 = vector.multi_reduction <add>, %144, %cst_59 [0] : vector<8x128xf32> to vector<128xf32>
    %146 = vector.shape_cast %145 : vector<128xf32> to vector<1x128xf32>
    %cst_60 = arith.constant 8.000000e+00 : f32
    %147 = vector.broadcast %cst_60 : f32 to vector<1x128xf32>
    %148 = arith.divf %146, %147 : vector<1x128xf32>
    %149 = vector.extract_strided_slice %135 {offsets = [0, 0], sizes = [1, 128], strides = [1, 1]} : vector<2x128xf32> to vector<1x128xf32>
    %cst_61 = arith.constant 9.99999974E-6 : f32
    %150 = vector.broadcast %cst_61 : f32 to vector<1x128xf32>
    %151 = arith.addf %148, %150 : vector<1x128xf32>
    %152 = math.rsqrt %151 : vector<1x128xf32>
    %153 = arith.mulf %149, %152 : vector<1x128xf32>
    %154 = vector.extract_strided_slice %135 {offsets = [1, 0], sizes = [1, 128], strides = [1, 1]} : vector<2x128xf32> to vector<1x128xf32>
    %155 = arith.mulf %139, %153 : vector<1x128xf32>
    %156 = arith.subf %154, %155 : vector<1x128xf32>
    %157 = vector.broadcast %153 : vector<1x128xf32> to vector<8x128xf32>
    %158 = arith.mulf %133, %157 : vector<8x128xf32>
    %159 = vector.broadcast %156 : vector<1x128xf32> to vector<8x128xf32>
    %160 = arith.addf %158, %159 : vector<8x128xf32>
    %cst_62 = arith.constant 0.000000e+00 : f32
    %161 = vector.broadcast %cst_62 : f32 to vector<8x128xf32>
    %162 = arith.maximumf %160, %161 : vector<8x128xf32>
    %c2_63 = arith.constant 2 : index
    %c0_64 = arith.constant 0 : index
    %c0_65 = arith.constant 0 : index
    %163 = vector.load %arg4[%c2_63, %c0_64, %c0_65] : memref<3x128x128xf32, #tpu.memory_space<vmem>>, vector<1x128x128xf32>
    %164 = vector.shape_cast %163 : vector<1x128x128xf32> to vector<128x128xf32>
    %cst_66 = arith.constant dense<0.000000e+00> : vector<8x128xf32>
    %165 = tpu.matmul %162, %164, %cst_66 {dimension_numbers = #tpu.dot_dimension_numbers<[1], [0], [0], [1], [0, 0, 1, 1], [], []>} : vector<8x128xf32>, vector<128x128xf32>, vector<8x128xf32> -> vector<8x128xf32>
    %c2_67 = arith.constant 2 : index
    %c0_68 = arith.constant 0 : index
    %c0_69 = arith.constant 0 : index
    %166 = vector.load %arg5[%c2_67, %c0_68, %c0_69] : memref<3x2x128xf32, #tpu.memory_space<vmem>>, vector<1x2x128xf32>
    %167 = vector.shape_cast %166 : vector<1x2x128xf32> to vector<2x128xf32>
    %cst_70 = arith.constant dense<0.000000e+00> : vector<128xf32>
    %168 = vector.multi_reduction <add>, %165, %cst_70 [0] : vector<8x128xf32> to vector<128xf32>
    %169 = vector.shape_cast %168 : vector<128xf32> to vector<1x128xf32>
    %cst_71 = arith.constant 8.000000e+00 : f32
    %170 = vector.broadcast %cst_71 : f32 to vector<1x128xf32>
    %171 = arith.divf %169, %170 : vector<1x128xf32>
    %172 = vector.broadcast %171 : vector<1x128xf32> to vector<8x128xf32>
    %173 = arith.subf %165, %172 : vector<8x128xf32>
    %174 = vector.broadcast %171 : vector<1x128xf32> to vector<8x128xf32>
    %175 = arith.subf %165, %174 : vector<8x128xf32>
    %176 = arith.mulf %173, %175 : vector<8x128xf32>
    %cst_72 = arith.constant dense<0.000000e+00> : vector<128xf32>
    %177 = vector.multi_reduction <add>, %176, %cst_72 [0] : vector<8x128xf32> to vector<128xf32>
    %178 = vector.shape_cast %177 : vector<128xf32> to vector<1x128xf32>
    %cst_73 = arith.constant 8.000000e+00 : f32
    %179 = vector.broadcast %cst_73 : f32 to vector<1x128xf32>
    %180 = arith.divf %178, %179 : vector<1x128xf32>
    %181 = vector.extract_strided_slice %167 {offsets = [0, 0], sizes = [1, 128], strides = [1, 1]} : vector<2x128xf32> to vector<1x128xf32>
    %cst_74 = arith.constant 9.99999974E-6 : f32
    %182 = vector.broadcast %cst_74 : f32 to vector<1x128xf32>
    %183 = arith.addf %180, %182 : vector<1x128xf32>
    %184 = math.rsqrt %183 : vector<1x128xf32>
    %185 = arith.mulf %181, %184 : vector<1x128xf32>
    %186 = vector.extract_strided_slice %167 {offsets = [1, 0], sizes = [1, 128], strides = [1, 1]} : vector<2x128xf32> to vector<1x128xf32>
    %187 = arith.mulf %171, %185 : vector<1x128xf32>
    %188 = arith.subf %186, %187 : vector<1x128xf32>
    %189 = vector.broadcast %185 : vector<1x128xf32> to vector<8x128xf32>
    %190 = arith.mulf %165, %189 : vector<8x128xf32>
    %191 = arith.addf %130, %190 : vector<8x128xf32>
    %192 = vector.broadcast %188 : vector<1x128xf32> to vector<8x128xf32>
    %193 = arith.addf %191, %192 : vector<8x128xf32>
    %cst_75 = arith.constant 0.000000e+00 : f32
    %194 = vector.broadcast %cst_75 : f32 to vector<8x128xf32>
    %195 = arith.maximumf %193, %194 : vector<8x128xf32>
    %c0_76 = arith.constant 0 : index
    %c0_77 = arith.constant 0 : index
    %196 = vector.load %arg6[%c0_76, %c0_77] : memref<8x128xf32, #tpu.memory_space<vmem>>, vector<8x128xf32>
    tpu.vector_store %arg6[%c0_76, %c0_77], %195 {strides = array<i32>} : memref<8x128xf32, #tpu.memory_space<vmem>>, vector<8x128xf32>,
    return
  }
  func.func @transform_0(%arg0: i32) -> (i32, i32) {
    %c0_i32 = arith.constant 0 : i32
    %c0_i32_0 = arith.constant 0 : i32
    %c0_i32_1 = arith.constant 0 : i32
    return %c0_i32, %c0_i32_0 : i32, i32
  }
  func.func @transform_1(%arg0: i32) -> (i32, i32, i32) {
    %c0_i32 = arith.constant 0 : i32
    %c0_i32_0 = arith.constant 0 : i32
    %c0_i32_1 = arith.constant 0 : i32
    %c0_i32_2 = arith.constant 0 : i32
    return %c0_i32, %c0_i32_0, %c0_i32_1 : i32, i32, i32
  }
  func.func @transform_2(%arg0: i32) -> (i32, i32, i32) {
    %c0_i32 = arith.constant 0 : i32
    %c0_i32_0 = arith.constant 0 : i32
    %c0_i32_1 = arith.constant 0 : i32
    %c0_i32_2 = arith.constant 0 : i32
    return %c0_i32, %c0_i32_0, %c0_i32_1 : i32, i32, i32
  }
  func.func @transform_3(%arg0: i32) -> (i32, i32, i32) {
    %c0_i32 = arith.constant 0 : i32
    %c0_i32_0 = arith.constant 0 : i32
    %c0_i32_1 = arith.constant 0 : i32
    %c0_i32_2 = arith.constant 0 : i32
    return %c0_i32, %c0_i32_0, %c0_i32_1 : i32, i32, i32
  }
  func.func @transform_4(%arg0: i32) -> (i32, i32, i32) {
    %c0_i32 = arith.constant 0 : i32
    %c0_i32_0 = arith.constant 0 : i32
    %c0_i32_1 = arith.constant 0 : i32
    %c0_i32_2 = arith.constant 0 : i32
    return %c0_i32, %c0_i32_0, %c0_i32_1 : i32, i32, i32
  }
  func.func @transform_5(%arg0: i32) -> (i32, i32) {
    %c0_i32 = arith.constant 0 : i32
    %c0_i32_0 = arith.constant 0 : i32
    %c0_i32_1 = arith.constant 0 : i32
    return %c0_i32, %c0_i32_0 : i32, i32
  }
}

</mosaic_0001>

<llo_original>
// kernel: residual_block_1d.1
$region0: #{residual_block_1d.1}
  #allocation0 [shape = 'u32[]', space=smem, size = 0x4, offset = 0x4, fixed_abs, tag = 'smem constant byte address 0x4 - core index']
  #allocation1 [shape = 'u32[72,128]{1,0:T(1,128)}', space=vmem, size = 0x9000, scoped, tag = 'internal scratch']
  %s0 = inlined_call_operand.vmem [shape: f32[8,128], index: 0, kind: input, shape index: {}]
  %s1 = inlined_call_operand.vmem [shape: f32[3,128,128], index: 1, kind: input, shape index: {}]
  %s2 = inlined_call_operand.vmem [shape: f32[3,2,128], index: 2, kind: input, shape index: {}]
  %s3 = inlined_call_operand.vmem [shape: f32[3,128,128], index: 3, kind: input, shape index: {}]
  %s4 = inlined_call_operand.vmem [shape: f32[3,2,128], index: 4, kind: input, shape index: {}]
  %s5 = inlined_call_operand.hbm [shape: f32[8,128], index: 5, kind: output, shape index: {}]
  %s6 = sld [smem:[#allocation0]]
  $region30: #{residual_block_1d.1} parent=0
    _
  %s8 = ssub.s32 1, %s6
  %s9 = scalar_select 0, %s8, %s6
  $region1: #{residual_block_1d.1} parent=0
    #allocation2 [shape = 'u8[4096]{0}', space=vmem, size = 0x1000, scoped, tag = 'output window, operand 0, single buffered']
    #allocation3 [shape = 's32[1]{0}', space=sflag, size = 0x4, scoped, tag = 'scoped memory for residual_block_1d.1']
    %10 = vsyncpa [#allocation3], 0
    // Predicated region
    $region2: #{residual_block_1d.1} parent=1 // pred_check
      _
    $region3: #{residual_block_1d.1} parent=1 // pred_check_branch
      %12 = sbr.rel (0) target = $region5
    $region4: #{residual_block_1d.1} parent=1 // pred_region
      _
    $region5: #{residual_block_1d.1} parent=1 // pred_fallthru
      _
    // Predicated region
    $region6: #{residual_block_1d.1} parent=1 // pred_check
      _
    $region7: #{residual_block_1d.1} parent=1 // pred_check_branch
      %14 = sbr.rel (0) target = $region9
    $region8: #{residual_block_1d.1} parent=1 // pred_region
      _
    $region9: #{residual_block_1d.1} parent=1 // pred_fallthru
      _
    // Predicated region
    $region10: #{residual_block_1d.1} parent=1 // pred_check
      _
    $region11: #{residual_block_1d.1} parent=1 // pred_check_branch
      %16 = sbr.rel (0) target = $region13
    $region12: #{residual_block_1d.1} parent=1 // pred_region
      _
    $region13: #{residual_block_1d.1} parent=1 // pred_fallthru
      _
    // Predicated region
    $region14: #{residual_block_1d.1} parent=1 // pred_check
      _
    $region15: #{residual_block_1d.1} parent=1 // pred_check_branch
      %18 = sbr.rel (0) target = $region17
    $region16: #{residual_block_1d.1} parent=1 // pred_region
      _
    $region17: #{residual_block_1d.1} parent=1 // pred_fallthru
      _
    // Predicated region
    $region18: #{residual_block_1d.1} parent=1 // pred_check
      _
    $region19: #{residual_block_1d.1} parent=1 // pred_check_branch
      %20 = sbr.rel (0) target = $region21
    $region20: #{residual_block_1d.1} parent=1 // pred_region
      _
    $region21: #{residual_block_1d.1} parent=1 // pred_fallthru
      _
    %v21 = vld [vmem:[%s0] sm:$0xff]
    %v22 = vld [vmem:[%s1] sm:$0xff]
    %v23 = vld [vmem:[%s1 + $0x8] sm:$0xff]
    %v24 = vld [vmem:[%s1 + $0x10] sm:$0xff]
    %v25 = vld [vmem:[%s1 + $0x18] sm:$0xff]
    %v26 = vld [vmem:[%s1 + $0x20] sm:$0xff]
    %v27 = vld [vmem:[%s1 + $0x28] sm:$0xff]
    %v28 = vld [vmem:[%s1 + $0x30] sm:$0xff]
    %v29 = vld [vmem:[%s1 + $0x38] sm:$0xff]
    %v30 = vld [vmem:[%s1 + $0x40] sm:$0xff]
    %v31 = vld [vmem:[%s1 + $0x48] sm:$0xff]
    %v32 = vld [vmem:[%s1 + $0x50] sm:$0xff]
    %v33 = vld [vmem:[%s1 + $0x58] sm:$0xff]
    %v34 = vld [vmem:[%s1 + $0x60] sm:$0xff]
    %v35 = vld [vmem:[%s1 + $0x68] sm:$0xff]
    %v36 = vld [vmem:[%s1 + $0x70] sm:$0xff]
    %v37 = vld [vmem:[%s1 + $0x78] sm:$0xff]
    %38 = vmatpush.msra.mxu0 %v37
    %39 = vmatpush.msra.mxu0 %v36
    %40 = vmatpush.msra.mxu0 %v35
    %41 = vmatpush.msra.mxu0 %v34
    %42 = vmatpush.msra.mxu0 %v33
    %43 = vmatpush.msra.mxu0 %v32
    %44 = vmatpush.msra.mxu0 %v31
    %45 = vmatpush.msra.mxu0 %v30
    %46 = vmatpush.msra.mxu0 %v29
    %47 = vmatpush.msra.mxu0 %v28
    %48 = vmatpush.msra.mxu0 %v27
    %49 = vmatpush.msra.mxu0 %v26
    %50 = vmatpush.msra.mxu0 %v25
    %51 = vmatpush.msra.mxu0 %v24
    %52 = vmatpush.msra.mxu0 %v23
    %53 = vmatpush.msra.mxu0 %v22
    %54 = vmatmul.f32.gmra.mxu0 %v21
    %v55 = vpop.f32.mrf.mxu0
    %v56 = vadd.f32 0.0, %v55
    %57 = vdwg.mxu0
    %v58 = vld [vmem:[%s2] sm:$0x3]
    %v59 = vrot.slane %v56, 4
    %v60 = vadd.f32 %v56, %v59
    %v61 = vrot.slane %v60, 2
    %v62 = vadd.f32 %v60, %v61
    %v63 = vrot.slane %v62, 1
    %v64 = vadd.f32 %v62, %v63
    %v65 = vrcp.pop 8.0
    %v66 = vmul.f32 8.0, %v65
    %v67 = vsub.f32 1.0, %v66
    %v68 = vmul.f32 %v65, %v67
    %v69 = vadd.f32 %v65, %v68
    %vm70 = vweird.f32 %v65
    %v71 = vsel %vm70, %v65, %v69
    %v72 = vmul.f32 %v64, %v71
    %v73 = vsub.f32 %v56, %v72
    %v74 = vmul.f32 %v73, %v73
    %v75 = vrot.slane %v74, 4
    %v76 = vadd.f32 %v74, %v75
    %v77 = vrot.slane %v76, 2
    %v78 = vadd.f32 %v76, %v77
    %v79 = vrot.slane %v78, 1
    %v80 = vadd.f32 %v78, %v79
    %v81 = vmul.f32 %v80, %v71
    %v82 = vadd.f32 %v81, 1e-05
    %v83 = vrsqrt.pop %v82
    %v84 = vmul.f32 %v83, %v82
    %v85 = vmul.f32 %v84, %v83
    %v86 = vmul.f32 0.5, %v85
    %v87 = vsub.f32 1.5, %v86
    %v88 = vmul.f32 %v83, %v87
    %vm89 = vweird.f32 %v82
    %vm90 = vweird.f32 %v83
    %vm91 = vmor %vm89, %vm90
    %v92 = vsel %vm91, %v83, %v88
    %v93 = vmul.f32 %v58, %v92
    %v94 = vmul.f32 %v72, %v93
    %v96 = vrot.slane %v94, 7
    %v98 = vsub.f32 %v58, %v96
    %v99 = vperm.slane %v93, 0
    %v100 = vmul.f32 %v56, %v99
    %v101 = vperm.slane %v98, 1
    %v102 = vadd.f32 %v100, %v101
    %v103 = vmax.f32 %v102, 0.0
    %v104 = vld [vmem:[%s3] sm:$0xff]
    %v105 = vld [vmem:[%s3 + $0x8] sm:$0xff]
    %v106 = vld [vmem:[%s3 + $0x10] sm:$0xff]
    %v107 = vld [vmem:[%s3 + $0x18] sm:$0xff]
    %v108 = vld [vmem:[%s3 + $0x20] sm:$0xff]
    %v109 = vld [vmem:[%s3 + $0x28] sm:$0xff]
    %v110 = vld [vmem:[%s3 + $0x30] sm:$0xff]
    %v111 = vld [vmem:[%s3 + $0x38] sm:$0xff]
    %v112 = vld [vmem:[%s3 + $0x40] sm:$0xff]
    %v113 = vld [vmem:[%s3 + $0x48] sm:$0xff]
    %v114 = vld [vmem:[%s3 + $0x50] sm:$0xff]
    %v115 = vld [vmem:[%s3 + $0x58] sm:$0xff]
    %v116 = vld [vmem:[%s3 + $0x60] sm:$0xff]
    %v117 = vld [vmem:[%s3 + $0x68] sm:$0xff]
    %v118 = vld [vmem:[%s3 + $0x70] sm:$0xff]
    %v119 = vld [vmem:[%s3 + $0x78] sm:$0xff]
    %120 = vmatpush.msra.mxu0 %v119
    %121 = vmatpush.msra.mxu0 %v118
    %122 = vmatpush.msra.mxu0 %v117
    %123 = vmatpush.msra.mxu0 %v116
    %124 = vmatpush.msra.mxu0 %v115
    %125 = vmatpush.msra.mxu0 %v114
    %126 = vmatpush.msra.mxu0 %v113
    %127 = vmatpush.msra.mxu0 %v112
    %128 = vmatpush.msra.mxu0 %v111
    %129 = vmatpush.msra.mxu0 %v110
    %130 = vmatpush.msra.mxu0 %v109
    %131 = vmatpush.msra.mxu0 %v108
    %132 = vmatpush.msra.mxu0 %v107
    %133 = vmatpush.msra.mxu0 %v106
    %134 = vmatpush.msra.mxu0 %v105
    %135 = vmatpush.msra.mxu0 %v104
    %136 = vmatmul.f32.gmra.mxu0 %v103
    %v137 = vpop.f32.mrf.mxu0
    %v138 = vadd.f32 0.0, %v137
    %139 = vdwg.mxu0
    %v140 = vld [vmem:[%s4] sm:$0x3]
    %v141 = vrot.slane %v138, 4
    %v142 = vadd.f32 %v138, %v141
    %v143 = vrot.slane %v142, 2
    %v144 = vadd.f32 %v142, %v143
    %v145 = vrot.slane %v144, 1
    %v146 = vadd.f32 %v144, %v145
    %v147 = vmul.f32 %v146, %v71
    %v148 = vsub.f32 %v138, %v147
    %v149 = vmul.f32 %v148, %v148
    %v150 = vrot.slane %v149, 4
    %v151 = vadd.f32 %v149, %v150
    %v152 = vrot.slane %v151, 2
    %v153 = vadd.f32 %v151, %v152
    %v154 = vrot.slane %v153, 1
    %v155 = vadd.f32 %v153, %v154
    %v156 = vmul.f32 %v155, %v71
    %v157 = vadd.f32 %v156, 1e-05
    %v158 = vrsqrt.pop %v157
    %v159 = vmul.f32 %v158, %v157
    %v160 = vmul.f32 %v159, %v158
    %v161 = vmul.f32 0.5, %v160
    %v162 = vsub.f32 1.5, %v161
    %v163 = vmul.f32 %v158, %v162
    %vm164 = vweird.f32 %v157
    %vm165 = vweird.f32 %v158
    %vm166 = vmor %vm164, %vm165
    %v167 = vsel %vm166, %v158, %v163
    %v168 = vmul.f32 %v140, %v167
    %v169 = vmul.f32 %v147, %v168
    %v171 = vrot.slane %v169, 7
    %v173 = vsub.f32 %v140, %v171
    %v174 = vperm.slane %v168, 0
    %v175 = vmul.f32 %v138, %v174
    %v176 = vadd.f32 %v21, %v175
    %v177 = vperm.slane %v173, 1
    %v178 = vadd.f32 %v176, %v177
    %v179 = vmax.f32 %v178, 0.0
    %s180 = scalar_lea.vmem %s1, 128
    %v181 = vld [vmem:[%s180] sm:$0xff]
    %v182 = vld [vmem:[%s180 + $0x8] sm:$0xff]
    %v183 = vld [vmem:[%s180 + $0x10] sm:$0xff]
    %v184 = vld [vmem:[%s180 + $0x18] sm:$0xff]
    %v185 = vld [vmem:[%s180 + $0x20] sm:$0xff]
    %v186 = vld [vmem:[%s180 + $0x28] sm:$0xff]
    %v187 = vld [vmem:[%s180 + $0x30] sm:$0xff]
    %v188 = vld [vmem:[%s180 + $0x38] sm:$0xff]
    %v189 = vld [vmem:[%s180 + $0x40] sm:$0xff]
    %v190 = vld [vmem:[%s180 + $0x48] sm:$0xff]
    %v191 = vld [vmem:[%s180 + $0x50] sm:$0xff]
    %v192 = vld [vmem:[%s180 + $0x58] sm:$0xff]
    %v193 = vld [vmem:[%s180 + $0x60] sm:$0xff]
    %v194 = vld [vmem:[%s180 + $0x68] sm:$0xff]
    %v195 = vld [vmem:[%s180 + $0x70] sm:$0xff]
    %v196 = vld [vmem:[%s180 + $0x78] sm:$0xff]
    %197 = vmatpush.msra.mxu0 %v196
    %198 = vmatpush.msra.mxu0 %v195
    %199 = vmatpush.msra.mxu0 %v194
    %200 = vmatpush.msra.mxu0 %v193
    %201 = vmatpush.msra.mxu0 %v192
    %202 = vmatpush.msra.mxu0 %v191
    %203 = vmatpush.msra.mxu0 %v190
    %204 = vmatpush.msra.mxu0 %v189
    %205 = vmatpush.msra.mxu0 %v188
    %206 = vmatpush.msra.mxu0 %v187
    %207 = vmatpush.msra.mxu0 %v186
    %208 = vmatpush.msra.mxu0 %v185
    %209 = vmatpush.msra.mxu0 %v184
    %210 = vmatpush.msra.mxu0 %v183
    %211 = vmatpush.msra.mxu0 %v182
    %212 = vmatpush.msra.mxu0 %v181
    %213 = vmatmul.f32.gmra.mxu0 %v179
    %v214 = vpop.f32.mrf.mxu0
    %v215 = vadd.f32 0.0, %v214
    %216 = vdwg.mxu0
    %s217 = scalar_lea.vmem %s2, 2
    %v218 = vld [vmem:[%s217] sm:$0x3]
    %v219 = vrot.slane %v215, 4
    %v220 = vadd.f32 %v215, %v219
    %v221 = vrot.slane %v220, 2
    %v222 = vadd.f32 %v220, %v221
    %v223 = vrot.slane %v222, 1
    %v224 = vadd.f32 %v222, %v223
    %v225 = vmul.f32 %v224, %v71
    %v226 = vsub.f32 %v215, %v225
    %v227 = vmul.f32 %v226, %v226
    %v228 = vrot.slane %v227, 4
    %v229 = vadd.f32 %v227, %v228
    %v230 = vrot.slane %v229, 2
    %v231 = vadd.f32 %v229, %v230
    %v232 = vrot.slane %v231, 1
    %v233 = vadd.f32 %v231, %v232
    %v234 = vmul.f32 %v233, %v71
    %v235 = vadd.f32 %v234, 1e-05
    %v236 = vrsqrt.pop %v235
    %v237 = vmul.f32 %v236, %v235
    %v238 = vmul.f32 %v237, %v236
    %v239 = vmul.f32 0.5, %v238
    %v240 = vsub.f32 1.5, %v239
    %v241 = vmul.f32 %v236, %v240
    %vm242 = vweird.f32 %v235
    %vm243 = vweird.f32 %v236
    %vm244 = vmor %vm242, %vm243
    %v245 = vsel %vm244, %v236, %v241
    %v246 = vmul.f32 %v218, %v245
    %v247 = vmul.f32 %v225, %v246
    %v249 = vrot.slane %v247, 7
    %v251 = vsub.f32 %v218, %v249
    %v252 = vperm.slane %v246, 0
    %v253 = vmul.f32 %v215, %v252
    %v254 = vperm.slane %v251, 1
    %v255 = vadd.f32 %v253, %v254
    %v256 = vmax.f32 %v255, 0.0
    %s257 = scalar_lea.vmem %s3, 128
    %v258 = vld [vmem:[%s257] sm:$0xff]
    %v259 = vld [vmem:[%s257 + $0x8] sm:$0xff]
    %v260 = vld [vmem:[%s257 + $0x10] sm:$0xff]
    %v261 = vld [vmem:[%s257 + $0x18] sm:$0xff]
    %v262 = vld [vmem:[%s257 + $0x20] sm:$0xff]
    %v263 = vld [vmem:[%s257 + $0x28] sm:$0xff]
    %v264 = vld [vmem:[%s257 + $0x30] sm:$0xff]
    %v265 = vld [vmem:[%s257 + $0x38] sm:$0xff]
    %v266 = vld [vmem:[%s257 + $0x40] sm:$0xff]
    %v267 = vld [vmem:[%s257 + $0x48] sm:$0xff]
    %v268 = vld [vmem:[%s257 + $0x50] sm:$0xff]
    %v269 = vld [vmem:[%s257 + $0x58] sm:$0xff]
    %v270 = vld [vmem:[%s257 + $0x60] sm:$0xff]
    %v271 = vld [vmem:[%s257 + $0x68] sm:$0xff]
    %v272 = vld [vmem:[%s257 + $0x70] sm:$0xff]
    %v273 = vld [vmem:[%s257 + $0x78] sm:$0xff]
    %274 = vmatpush.msra.mxu0 %v273
    %275 = vmatpush.msra.mxu0 %v272
    %276 = vmatpush.msra.mxu0 %v271
    %277 = vmatpush.msra.mxu0 %v270
    %278 = vmatpush.msra.mxu0 %v269
    %279 = vmatpush.msra.mxu0 %v268
    %280 = vmatpush.msra.mxu0 %v267
    %281 = vmatpush.msra.mxu0 %v266
    %282 = vmatpush.msra.mxu0 %v265
    %283 = vmatpush.msra.mxu0 %v264
    %284 = vmatpush.msra.mxu0 %v263
    %285 = vmatpush.msra.mxu0 %v262
    %286 = vmatpush.msra.mxu0 %v261
    %287 = vmatpush.msra.mxu0 %v260
    %288 = vmatpush.msra.mxu0 %v259
    %289 = vmatpush.msra.mxu0 %v258
    %290 = vmatmul.f32.gmra.mxu0 %v256
    %v291 = vpop.f32.mrf.mxu0
    %v292 = vadd.f32 0.0, %v291
    %293 = vdwg.mxu0
    %s294 = scalar_lea.vmem %s4, 2
    %v295 = vld [vmem:[%s294] sm:$0x3]
    %v296 = vrot.slane %v292, 4
    %v297 = vadd.f32 %v292, %v296
    %v298 = vrot.slane %v297, 2
    %v299 = vadd.f32 %v297, %v298
    %v300 = vrot.slane %v299, 1
    %v301 = vadd.f32 %v299, %v300
    %v302 = vmul.f32 %v301, %v71
    %v303 = vsub.f32 %v292, %v302
    %v304 = vmul.f32 %v303, %v303
    %v305 = vrot.slane %v304, 4
    %v306 = vadd.f32 %v304, %v305
    %v307 = vrot.slane %v306, 2
    %v308 = vadd.f32 %v306, %v307
    %v309 = vrot.slane %v308, 1
    %v310 = vadd.f32 %v308, %v309
    %v311 = vmul.f32 %v310, %v71
    %v312 = vadd.f32 %v311, 1e-05
    %v313 = vrsqrt.pop %v312
    %v314 = vmul.f32 %v313, %v312
    %v315 = vmul.f32 %v314, %v313
    %v316 = vmul.f32 0.5, %v315
    %v317 = vsub.f32 1.5, %v316
    %v318 = vmul.f32 %v313, %v317
    %vm319 = vweird.f32 %v312
    %vm320 = vweird.f32 %v313
    %vm321 = vmor %vm319, %vm320
    %v322 = vsel %vm321, %v313, %v318
    %v323 = vmul.f32 %v295, %v322
    %v324 = vmul.f32 %v302, %v323
    %v326 = vrot.slane %v324, 7
    %v328 = vsub.f32 %v295, %v326
    %v329 = vperm.slane %v323, 0
    %v330 = vmul.f32 %v292, %v329
    %v331 = vadd.f32 %v179, %v330
    %v332 = vperm.slane %v328, 1
    %v333 = vadd.f32 %v331, %v332
    %v334 = vmax.f32 %v333, 0.0
    %s335 = scalar_lea.vmem %s1, 256
    %v336 = vld [vmem:[%s335] sm:$0xff]
    %v337 = vld [vmem:[%s335 + $0x8] sm:$0xff]
    %v338 = vld [vmem:[%s335 + $0x10] sm:$0xff]
    %v339 = vld [vmem:[%s335 + $0x18] sm:$0xff]
    %v340 = vld [vmem:[%s335 + $0x20] sm:$0xff]
    %v341 = vld [vmem:[%s335 + $0x28] sm:$0xff]
    %v342 = vld [vmem:[%s335 + $0x30] sm:$0xff]
    %v343 = vld [vmem:[%s335 + $0x38] sm:$0xff]
    %v344 = vld [vmem:[%s335 + $0x40] sm:$0xff]
    %v345 = vld [vmem:[%s335 + $0x48] sm:$0xff]
    %v346 = vld [vmem:[%s335 + $0x50] sm:$0xff]
    %v347 = vld [vmem:[%s335 + $0x58] sm:$0xff]
    %v348 = vld [vmem:[%s335 + $0x60] sm:$0xff]
    %v349 = vld [vmem:[%s335 + $0x68] sm:$0xff]
    %v350 = vld [vmem:[%s335 + $0x70] sm:$0xff]
    %v351 = vld [vmem:[%s335 + $0x78] sm:$0xff]
    %352 = vmatpush.msra.mxu0 %v351
    %353 = vmatpush.msra.mxu0 %v350
    %354 = vmatpush.msra.mxu0 %v349
    %355 = vmatpush.msra.mxu0 %v348
    %356 = vmatpush.msra.mxu0 %v347
    %357 = vmatpush.msra.mxu0 %v346
    %358 = vmatpush.msra.mxu0 %v345
    %359 = vmatpush.msra.mxu0 %v344
    %360 = vmatpush.msra.mxu0 %v343
    %361 = vmatpush.msra.mxu0 %v342
    %362 = vmatpush.msra.mxu0 %v341
    %363 = vmatpush.msra.mxu0 %v340
    %364 = vmatpush.msra.mxu0 %v339
    %365 = vmatpush.msra.mxu0 %v338
    %366 = vmatpush.msra.mxu0 %v337
    %367 = vmatpush.msra.mxu0 %v336
    %368 = vmatmul.f32.gmra.mxu0 %v334
    %v369 = vpop.f32.mrf.mxu0
    %v370 = vadd.f32 0.0, %v369
    %371 = vdwg.mxu0
    %s372 = scalar_lea.vmem %s2, 4
    %v373 = vld [vmem:[%s372] sm:$0x3]
    %v374 = vrot.slane %v370, 4
    %v375 = vadd.f32 %v370, %v374
    %v376 = vrot.slane %v375, 2
    %v377 = vadd.f32 %v375, %v376
    %v378 = vrot.slane %v377, 1
    %v379 = vadd.f32 %v377, %v378
    %v380 = vmul.f32 %v379, %v71
    %v381 = vsub.f32 %v370, %v380
    %v382 = vmul.f32 %v381, %v381
    %v383 = vrot.slane %v382, 4
    %v384 = vadd.f32 %v382, %v383
    %v385 = vrot.slane %v384, 2
    %v386 = vadd.f32 %v384, %v385
    %v387 = vrot.slane %v386, 1
    %v388 = vadd.f32 %v386, %v387
    %v389 = vmul.f32 %v388, %v71
    %v390 = vadd.f32 %v389, 1e-05
    %v391 = vrsqrt.pop %v390
    %v392 = vmul.f32 %v391, %v390
    %v393 = vmul.f32 %v392, %v391
    %v394 = vmul.f32 0.5, %v393
    %v395 = vsub.f32 1.5, %v394
    %v396 = vmul.f32 %v391, %v395
    %vm397 = vweird.f32 %v390
    %vm398 = vweird.f32 %v391
    %vm399 = vmor %vm397, %vm398
    %v400 = vsel %vm399, %v391, %v396
    %v401 = vmul.f32 %v373, %v400
    %v402 = vmul.f32 %v380, %v401
    %v404 = vrot.slane %v402, 7
    %v406 = vsub.f32 %v373, %v404
    %v407 = vperm.slane %v401, 0
    %v408 = vmul.f32 %v370, %v407
    %v409 = vperm.slane %v406, 1
    %v410 = vadd.f32 %v408, %v409
    %v411 = vmax.f32 %v410, 0.0
    %s412 = scalar_lea.vmem %s3, 256
    %v413 = vld [vmem:[%s412] sm:$0xff]
    %v414 = vld [vmem:[%s412 + $0x8] sm:$0xff]
    %v415 = vld [vmem:[%s412 + $0x10] sm:$0xff]
    %v416 = vld [vmem:[%s412 + $0x18] sm:$0xff]
    %v417 = vld [vmem:[%s412 + $0x20] sm:$0xff]
    %v418 = vld [vmem:[%s412 + $0x28] sm:$0xff]
    %v419 = vld [vmem:[%s412 + $0x30] sm:$0xff]
    %v420 = vld [vmem:[%s412 + $0x38] sm:$0xff]
    %v421 = vld [vmem:[%s412 + $0x40] sm:$0xff]
    %v422 = vld [vmem:[%s412 + $0x48] sm:$0xff]
    %v423 = vld [vmem:[%s412 + $0x50] sm:$0xff]
    %v424 = vld [vmem:[%s412 + $0x58] sm:$0xff]
    %v425 = vld [vmem:[%s412 + $0x60] sm:$0xff]
    %v426 = vld [vmem:[%s412 + $0x68] sm:$0xff]
    %v427 = vld [vmem:[%s412 + $0x70] sm:$0xff]
    %v428 = vld [vmem:[%s412 + $0x78] sm:$0xff]
    %429 = vmatpush.msra.mxu0 %v428
    %430 = vmatpush.msra.mxu0 %v427
    %431 = vmatpush.msra.mxu0 %v426
    %432 = vmatpush.msra.mxu0 %v425
    %433 = vmatpush.msra.mxu0 %v424
    %434 = vmatpush.msra.mxu0 %v423
    %435 = vmatpush.msra.mxu0 %v422
    %436 = vmatpush.msra.mxu0 %v421
    %437 = vmatpush.msra.mxu0 %v420
    %438 = vmatpush.msra.mxu0 %v419
    %439 = vmatpush.msra.mxu0 %v418
    %440 = vmatpush.msra.mxu0 %v417
    %441 = vmatpush.msra.mxu0 %v416
    %442 = vmatpush.msra.mxu0 %v415
    %443 = vmatpush.msra.mxu0 %v414
    %444 = vmatpush.msra.mxu0 %v413
    %445 = vmatmul.f32.gmra.mxu0 %v411
    %v446 = vpop.f32.mrf.mxu0
    %v447 = vadd.f32 0.0, %v446
    %448 = vdwg.mxu0
    %s449 = scalar_lea.vmem %s4, 4
    %v450 = vld [vmem:[%s449] sm:$0x3]
    %v451 = vrot.slane %v447, 4
    %v452 = vadd.f32 %v447, %v451
    %v453 = vrot.slane %v452, 2
    %v454 = vadd.f32 %v452, %v453
    %v455 = vrot.slane %v454, 1
    %v456 = vadd.f32 %v454, %v455
    %v457 = vmul.f32 %v456, %v71
    %v458 = vsub.f32 %v447, %v457
    %v459 = vmul.f32 %v458, %v458
    %v460 = vrot.slane %v459, 4
    %v461 = vadd.f32 %v459, %v460
    %v462 = vrot.slane %v461, 2
    %v463 = vadd.f32 %v461, %v462
    %v464 = vrot.slane %v463, 1
    %v465 = vadd.f32 %v463, %v464
    %v466 = vmul.f32 %v465, %v71
    %v467 = vadd.f32 %v466, 1e-05
    %v468 = vrsqrt.pop %v467
    %v469 = vmul.f32 %v468, %v467
    %v470 = vmul.f32 %v469, %v468
    %v471 = vmul.f32 0.5, %v470
    %v472 = vsub.f32 1.5, %v471
    %v473 = vmul.f32 %v468, %v472
    %vm474 = vweird.f32 %v467
    %vm475 = vweird.f32 %v468
    %vm476 = vmor %vm474, %vm475
    %v477 = vsel %vm476, %v468, %v473
    %v478 = vmul.f32 %v450, %v477
    %v479 = vmul.f32 %v457, %v478
    %v481 = vrot.slane %v479, 7
    %v483 = vsub.f32 %v450, %v481
    %v484 = vperm.slane %v478, 0
    %v485 = vmul.f32 %v447, %v484
    %v486 = vadd.f32 %v334, %v485
    %v487 = vperm.slane %v483, 1
    %v488 = vadd.f32 %v486, %v487
    %v489 = vmax.f32 %v488, 0.0
    %490 = vst [vmem:[#allocation2] sm:$0xff] %v489
    // Predicated region
    $region22: #{residual_block_1d.1} parent=1 // pred_check
      _
    $region23: #{residual_block_1d.1} parent=1 // pred_check_branch
      %492 = sbr.rel (0) target = $region25
    $region24: #{residual_block_1d.1} parent=1 // pred_region
      %494 = vsyncadd [#allocation3], 0
      %s496 = sshll.u32 [#allocation2], 4
      %s497 = int_to_ptr.vmem [resolvable:$true] %s496
      %s498 = sshll.u32 %s5, 4
      %s499 = int_to_ptr.hbm [resolvable:$true] %s498
      %501 = dma.vmem_to_hbm [thread:$0]  %s497, 128, %s499, [#allocation3]
    $region25: #{residual_block_1d.1} parent=1 // pred_fallthru
      _
    // Predicated region
    $region26: #{residual_block_1d.1} parent=1 // pred_check
      _
    $region27: #{residual_block_1d.1} parent=1 // pred_check_branch
      %503 = sbr.rel (0) target = $region29
    $region28: #{residual_block_1d.1} parent=1 // pred_region
      %505 = dma.done [#allocation3], 128
    $region29: #{residual_block_1d.1} parent=1 // pred_fallthru
      _
    %506 = vsyncpa [#allocation3], 1

</llo_original>
